<compile_context>
chip_gen: v6e
topology: v6e:2x2x1
jax: 0.10.0
libtpu: 0.0.40
codegen_flags: <defaults>
</compile_context>

<pallas_src>
import jax
import jax.numpy as jnp
import numpy as np
from jax.experimental import pallas as pl
from jax.experimental.pallas import tpu as pltpu


# ----------------------------------------------------------------------------
# Pallas kernel: weighted logit sum over heads, stable exp, per-class bias,
# renormalization over classes.  Mathematically identical to
#   softmax-renorm(exp(sum_h w_h * log_softmax(x_h)) * bias)
# because every per-head logsumexp is constant across classes and cancels in
# the final normalization.
# ----------------------------------------------------------------------------
def ensemble_kernel(x_ref, w_ref, b_ref, o_ref):
    # x_ref: (TB, E, C) VMEM logits (natural batch-major layout)
    # w_ref: (E,)       SMEM geometric weights (scalars)
    # b_ref: (1, C)     VMEM per-class bias
    # o_ref: (TB, C)    VMEM output probabilities
    num_heads = x_ref.shape[1]

    # Unrolled head reduction: acc = sum_h w[h] * x[:, h, :]  (scalar * vreg).
    acc = x_ref[:, 0, :].astype(jnp.float32) * w_ref[0]
    for h in range(1, num_heads):
        acc = acc + x_ref[:, h, :].astype(jnp.float32) * w_ref[h]

    # Row-max subtraction for stability (cancels in the normalization, just
    # like the per-head logsumexp terms do).
    m = jnp.max(acc, axis=-1, keepdims=True)                    # (TB, 1)
    e = jnp.exp(acc - m) * b_ref[...]                           # (TB,C)*(1,C)
    denom = jnp.sum(e, axis=-1, keepdims=True)                  # (TB, 1)
    # Exact division (denom is only a (TB,1) strip; approx reciprocal was the
    # source of the previous tolerance failure).
    o_ref[...] = (e / denom).astype(o_ref.dtype)
    # NOTE: when B % TB != 0 the padded rows of the last block compute on
    # uninitialized data; each row is independent and padded rows are never
    # written back, so this is harmless.


def _pick_batch_tile(batch: int, num_heads: int, num_classes: int,
                     in_itemsize: int) -> int:
    """Sublane-aligned batch tiles targeting >=4 pipelined grid steps while
    keeping the double-buffered VMEM footprint well under the smallest scoped
    default (16 MiB on v5e; v7x has 64 MiB physical)."""
    if batch <= 64:
        return batch                                # single block, tiny batch
    # Per-row VMEM bytes: 2x double-buffered input block rows + 2x output
    # block rows (f32) + a few f32 elementwise temporaries.
    per_row = (2 * num_heads * num_classes * in_itemsize
               + 2 * num_classes * 4
               + 3 * num_classes * 4)
    tb_vmem = (12 * 1024 * 1024) // max(per_row, 1)
    tb = min(1024, tb_vmem, -(-batch // 4))         # >= 4 grid steps
    return max(8, (tb // 8) * 8)                    # sublane-aligned


def geometric_weighted_ensemble(head_logits, weight, bias, exit_id):
    """head_logits: (B, num_heads, C) stacked base-model outputs.

    Mirrors the PyTorch forward:
        x = stack(outputs, dim=1)[:, :exit_id+1, :]
        x = log_softmax(x, -1)
        x = (x * weight).sum(1).exp() * bias
        x = x / x.sum(1, keepdims=True)
    """
    B, _, C = head_logits.shape
    E = exit_id + 1
    # PyTorch broadcasting of (B, E, C) * (1, num_heads, 1) requires
    # E == num_heads; the slice below is therefore a no-op (and compiles away).
    x = head_logits[:, :E, :]
    assert weight.shape[1] == E, "kernel assumes exit_id + 1 == num_heads"

    w = weight.reshape(E).astype(jnp.float32)                   # SMEM scalars
    b = bias.reshape(1, C).astype(jnp.float32)

    TB = _pick_batch_tile(B, E, C, jnp.dtype(x.dtype).itemsize)
    grid = (pl.cdiv(B, TB),)

    return pl.pallas_call(
        ensemble_kernel,
        out_shape=jax.ShapeDtypeStruct((B, C), jnp.float32),
        grid=grid,
        in_specs=[
            # Natural (B, E, C) layout; full head axis inside the block, so no
            # HBM transpose/relayout is ever materialized.
            pl.BlockSpec((TB, E, C), lambda i: (i, 0, 0)),
            pl.BlockSpec(memory_space=pltpu.MemorySpace.SMEM),  # weights
            pl.BlockSpec((1, C), lambda i: (0, 0)),             # bias
        ],
        out_specs=pl.BlockSpec((TB, C), lambda i: (i, 0)),
        compiler_params=pltpu.CompilerParams(
            dimension_semantics=("parallel",),
            vmem_limit_bytes=32 * 1024 * 1024,
        ),
    )(x, w, b)


# ----------------------------------------------------------------------------
# Synthetic frozen base model (plain JAX glue): per-head linear over the
# flattened NCHW input, producing (B, num_heads, C) stacked logits.
# ----------------------------------------------------------------------------
def base_model_forward(x_nchw, head_w, head_b):
    B = x_nchw.shape[0]
    flat = x_nchw.reshape(B, -1)                                # (B, F)
    logits = jnp.einsum("bf,hfc->bhc", flat, head_w) + head_b[None]
    return logits                                               # (B, H, C)


def reference_forward(head_logits, weight, bias, exit_id):
    x = head_logits[:, : exit_id + 1, :]
    x = jax.nn.log_softmax(x, axis=-1)
    x = jnp.exp(jnp.sum(x * weight, axis=1)) * bias
    return x / jnp.sum(x, axis=1, keepdims=True)


if __name__ == "__main__":
    # Small shapes consistent with the module.
    B, C_in, HW = 2, 4, 16
    num_heads, num_classes = 4, 128
    exit_id = num_heads - 1                                     # use all heads

    key = jax.random.PRNGKey(0)
    k_x, k_w, k_hw, k_hb = jax.random.split(key, 4)

    # Input image batch (NCHW, as in the PyTorch conv convention).
    x = jax.random.normal(k_x, (B, C_in, HW, HW), dtype=jnp.float32)

    # Deterministic parameter init matching __init__ shapes:
    #   _weight ~ N(0, 0.01), shape (1, num_heads, 1);  _bias = ones(1, C)
    weight = 0.01 * jax.random.normal(k_w, (1, num_heads, 1), dtype=jnp.float32)
    bias = jnp.ones((1, num_classes), dtype=jnp.float32)
    # NOTE: self.EPS is defined in __init__ but never used in forward.

    # Synthetic frozen base-model params.
    F = C_in * HW * HW
    head_w = 0.02 * jax.random.normal(k_hw, (num_heads, F, num_classes),
                                      dtype=jnp.float32)
    head_b = 0.01 * jax.random.normal(k_hb, (num_heads, num_classes),
                                      dtype=jnp.float32)

    # Frozen base model (torch.no_grad equivalent: stop_gradient / plain JAX).
    head_logits = jax.lax.stop_gradient(base_model_forward(x, head_w, head_b))

    out = geometric_weighted_ensemble(head_logits, weight, bias, exit_id)
    out = jax.block_until_ready(out)

    ref = reference_forward(head_logits, weight, bias, exit_id)
    np.testing.assert_allclose(np.asarray(out), np.asarray(ref),
                               rtol=5e-4, atol=1e-6)
    print("KERNEL_OK")
</pallas_src>

<mosaic_0001>
module attributes {stable_mosaic.version = 11 : i64} {
  func.func @ensemble_kernel(%arg0: i32, %arg1: memref<2x4x128xf32, #tpu.memory_space<vmem>>, %arg2: memref<4xf32, #tpu.memory_space<smem>>, %arg3: memref<1x128xf32, #tpu.memory_space<vmem>>, %arg4: memref<2x128xf32, #tpu.memory_space<vmem>>) attributes {dimension_semantics = [#tpu.dimension_semantics<parallel>], iteration_bounds = array<i64: 1>, scalar_prefetch = 0 : i64, scratch_operands = 0 : i64, tpu.core_type = #tpu.core_type<tc>, window_params = [{transform_indices = @transform_0, window_bounds = array<i64: 2, 4, 128>}, {transform_indices = @transform_1, window_bounds = array<i64: 4>}, {pipeline_mode = #tpu.pipeline_mode<synchronous>, transform_indices = @transform_2, window_bounds = array<i64: 1, 128>}, {transform_indices = @transform_3, window_bounds = array<i64: 2, 128>}]} {
    %c0 = arith.constant 0 : index
    %c0_0 = arith.constant 0 : index
    %c0_1 = arith.constant 0 : index
    %0 = vector.load %arg1[%c0, %c0_0, %c0_1] : memref<2x4x128xf32, #tpu.memory_space<vmem>>, vector<2x1x128xf32>
    %1 = vector.shape_cast %0 : vector<2x1x128xf32> to vector<2x128xf32>
    %c0_2 = arith.constant 0 : index
    %2 = memref.load %arg2[%c0_2] : memref<4xf32, #tpu.memory_space<smem>>
    %3 = vector.broadcast %2 : f32 to vector<2x128xf32>
    %4 = arith.mulf %1, %3 : vector<2x128xf32>
    %c0_3 = arith.constant 0 : index
    %c1 = arith.constant 1 : index
    %c0_4 = arith.constant 0 : index
    %5 = vector.load %arg1[%c0_3, %c1, %c0_4] : memref<2x4x128xf32, #tpu.memory_space<vmem>>, vector<2x1x128xf32>
    %6 = vector.shape_cast %5 : vector<2x1x128xf32> to vector<2x128xf32>
    %c1_5 = arith.constant 1 : index
    %7 = memref.load %arg2[%c1_5] : memref<4xf32, #tpu.memory_space<smem>>
    %8 = vector.broadcast %7 : f32 to vector<2x128xf32>
    %9 = arith.mulf %6, %8 : vector<2x128xf32>
    %10 = arith.addf %4, %9 : vector<2x128xf32>
    %c0_6 = arith.constant 0 : index
    %c2 = arith.constant 2 : index
    %c0_7 = arith.constant 0 : index
    %11 = vector.load %arg1[%c0_6, %c2, %c0_7] : memref<2x4x128xf32, #tpu.memory_space<vmem>>, vector<2x1x128xf32>
    %12 = vector.shape_cast %11 : vector<2x1x128xf32> to vector<2x128xf32>
    %c2_8 = arith.constant 2 : index
    %13 = memref.load %arg2[%c2_8] : memref<4xf32, #tpu.memory_space<smem>>
    %14 = vector.broadcast %13 : f32 to vector<2x128xf32>
    %15 = arith.mulf %12, %14 : vector<2x128xf32>
    %16 = arith.addf %10, %15 : vector<2x128xf32>
    %c0_9 = arith.constant 0 : index
    %c3 = arith.constant 3 : index
    %c0_10 = arith.constant 0 : index
    %17 = vector.load %arg1[%c0_9, %c3, %c0_10] : memref<2x4x128xf32, #tpu.memory_space<vmem>>, vector<2x1x128xf32>
    %18 = vector.shape_cast %17 : vector<2x1x128xf32> to vector<2x128xf32>
    %c3_11 = arith.constant 3 : index
    %19 = memref.load %arg2[%c3_11] : memref<4xf32, #tpu.memory_space<smem>>
    %20 = vector.broadcast %19 : f32 to vector<2x128xf32>
    %21 = arith.mulf %18, %20 : vector<2x128xf32>
    %22 = arith.addf %16, %21 : vector<2x128xf32>
    %cst = arith.constant dense<0xFF800000> : vector<2xf32>
    %23 = vector.multi_reduction <maximumf>, %22, %cst [1] : vector<2x128xf32> to vector<2xf32>
    %24 = vector.shape_cast %23 : vector<2xf32> to vector<2x1xf32>
    %25 = vector.broadcast %24 : vector<2x1xf32> to vector<2x128xf32>
    %26 = arith.subf %22, %25 : vector<2x128xf32>
    %27 = math.exp %26 : vector<2x128xf32>
    %c0_12 = arith.constant 0 : index
    %c0_13 = arith.constant 0 : index
    %28 = vector.load %arg3[%c0_12, %c0_13] : memref<1x128xf32, #tpu.memory_space<vmem>>, vector<1x128xf32>
    %29 = vector.broadcast %28 : vector<1x128xf32> to vector<2x128xf32>
    %30 = arith.mulf %27, %29 : vector<2x128xf32>
    %cst_14 = arith.constant dense<0.000000e+00> : vector<2xf32>
    %31 = vector.multi_reduction <add>, %30, %cst_14 [1] : vector<2x128xf32> to vector<2xf32>
    %32 = vector.shape_cast %31 : vector<2xf32> to vector<2x1xf32>
    %33 = vector.broadcast %32 : vector<2x1xf32> to vector<2x128xf32>
    %34 = arith.divf %30, %33 : vector<2x128xf32>
    %c0_15 = arith.constant 0 : index
    %c0_16 = arith.constant 0 : index
    %35 = vector.load %arg4[%c0_15, %c0_16] : memref<2x128xf32, #tpu.memory_space<vmem>>, vector<2x128xf32>
    tpu.vector_store %arg4[%c0_15, %c0_16], %34 {strides = array<i32>} : memref<2x128xf32, #tpu.memory_space<vmem>>, vector<2x128xf32>,
    return
  }
  func.func @transform_0(%arg0: i32) -> (i32, i32, i32) {
    %c0_i32 = arith.constant 0 : i32
    %c0_i32_0 = arith.constant 0 : i32
    %c0_i32_1 = arith.constant 0 : i32
    return %arg0, %c0_i32, %c0_i32_0 : i32, i32, i32
  }
  func.func @transform_1(%arg0: i32) -> i32 {
    %c0_i32 = arith.constant 0 : i32
    %c0_i32_0 = arith.constant 0 : i32
    return %c0_i32 : i32
  }
  func.func @transform_2(%arg0: i32) -> (i32, i32) {
    %c0_i32 = arith.constant 0 : i32
    %c0_i32_0 = arith.constant 0 : i32
    %c0_i32_1 = arith.constant 0 : i32
    return %c0_i32, %c0_i32_0 : i32, i32
  }
  func.func @transform_3(%arg0: i32) -> (i32, i32) {
    %c0_i32 = arith.constant 0 : i32
    %c0_i32_0 = arith.constant 0 : i32
    return %arg0, %c0_i32 : i32, i32
  }
}

</mosaic_0001>

<llo_original>
// kernel: tpu_custom_call.1
$region0: #{tpu_custom_call.1}
  #allocation0 [shape = 'u32[]', space=smem, size = 0x4, offset = 0x4, fixed_abs, tag = 'smem constant byte address 0x4 - core index']
  #allocation1 [shape = 'u32[144,128]{1,0:T(1,128)}', space=vmem, size = 0x12000, scoped, tag = 'internal scratch']
  %s0 = inlined_call_operand.hbm [shape: f32[2,4,128], index: 0, kind: input, shape index: {}]
  %s1 = inlined_call_operand.vmem [shape: f32[4], index: 1, kind: input, shape index: {}]
  %s2 = inlined_call_operand.vmem [shape: f32[1,128], index: 2, kind: input, shape index: {}]
  %s3 = inlined_call_operand.hbm [shape: f32[2,128], index: 3, kind: output, shape index: {}]
  %s4 = sld [smem:[#allocation0]]
  $region30: #{tpu_custom_call.1} parent=0
    _
  %s6 = ssub.s32 1, %s4
  %s7 = scalar_select 0, %s6, %s4
  $region1: #{tpu_custom_call.1} parent=0
    #allocation2 [shape = 'u8[4096]{0}', space=vmem, size = 0x1000, scoped, tag = 'input window, operand 0, single buffered']
    #allocation3 [shape = 's32[1]{0}', space=sflag, size = 0x4, scoped, tag = 'scoped memory for tpu_custom_call.1']
    #allocation4 [shape = 's32[1]{0}', space=sflag, size = 0x4, scoped, tag = 'scoped memory for tpu_custom_call.1']
    #allocation5 [shape = 's32[1]{0}', space=sflag, size = 0x4, scoped, tag = 'scoped memory for tpu_custom_call.1']
    #allocation6 [shape = 'u8[512]{0}', space=smem, size = 0x200, scoped, tag = 'input window, operand 1, single buffered']
    #allocation7 [shape = 'u8[1024]{0}', space=vmem, size = 0x400, scoped, tag = 'output window, operand 0, single buffered']
    %8 = vsyncpa [#allocation3], 0
    %9 = vsyncpa [#allocation5], 0
    %10 = vsyncpa [#allocation4], 0
    // Predicated region
    $region2: #{tpu_custom_call.1} parent=1 // pred_check
      _
    $region3: #{tpu_custom_call.1} parent=1 // pred_check_branch
      %12 = sbr.rel (0) target = $region5
    $region4: #{tpu_custom_call.1} parent=1 // pred_region
      %s14 = ssub.s32 128, 128
      %15 = vsyncadd [#allocation3], %s14
      %s16 = sshll.u32 [#allocation2], 4
      %s17 = int_to_ptr.vmem [resolvable:$true] %s16
      %22 = dma.hbm_to_vmem [thread:$0]  %s0, 128, %s17, [#allocation3], 64, 64, 4
    $region5: #{tpu_custom_call.1} parent=1 // pred_fallthru
      _
    // Predicated region
    $region6: #{tpu_custom_call.1} parent=1 // pred_check
      _
    $region7: #{tpu_custom_call.1} parent=1 // pred_check_branch
      %24 = sbr.rel (0) target = $region9
    $region8: #{tpu_custom_call.1} parent=1 // pred_region
      %s26 = ssub.s32 16, 16
      %27 = vsyncadd [#allocation5], %s26
      %s29 = sshll.u32 %s1, 4
      %s30 = int_to_ptr.vmem [resolvable:$true] %s29
      %32 = dma.vmem_to_smem %s30, 16, [#allocation6], [#allocation5]
    $region9: #{tpu_custom_call.1} parent=1 // pred_fallthru
      _
    // Predicated region
    $region10: #{tpu_custom_call.1} parent=1 // pred_check
      _
    $region11: #{tpu_custom_call.1} parent=1 // pred_check_branch
      %34 = sbr.rel (0) target = $region13
    $region12: #{tpu_custom_call.1} parent=1 // pred_region
      _
    $region13: #{tpu_custom_call.1} parent=1 // pred_fallthru
      _
    // Predicated region
    $region14: #{tpu_custom_call.1} parent=1 // pred_check
      _
    $region15: #{tpu_custom_call.1} parent=1 // pred_check_branch
      %36 = sbr.rel (0) target = $region17
    $region16: #{tpu_custom_call.1} parent=1 // pred_region
      %37 = dma.done [#allocation3], 128
    $region17: #{tpu_custom_call.1} parent=1 // pred_fallthru
      _
    // Predicated region
    $region18: #{tpu_custom_call.1} parent=1 // pred_check
      _
    $region19: #{tpu_custom_call.1} parent=1 // pred_check_branch
      %39 = sbr.rel (0) target = $region21
    $region20: #{tpu_custom_call.1} parent=1 // pred_region
      %40 = dma.done [#allocation5], 16
    $region21: #{tpu_custom_call.1} parent=1 // pred_fallthru
      _
    %41 = sfence
    %v42 = vld [vmem:[#allocation2] sm:$0x1]
    %v43 = vld [vmem:[#allocation2 + $0x4] sm:$0x1]
    %s44 = sld [smem:[#allocation6]]
    %v45 = vstv %s44
    %v46 = vmul.f32 %v42, %v45
    %v47 = vmul.f32 %v43, %v45
    %v48 = vld [vmem:[#allocation2 + $0x1] sm:$0x1]
    %v49 = vld [vmem:[#allocation2 + $0x5] sm:$0x1]
    %s50 = sld [smem:[#allocation6 + $0x1]]
    %v51 = vstv %s50
    %v52 = vmul.f32 %v48, %v51
    %v53 = vmul.f32 %v49, %v51
    %v54 = vadd.f32 %v46, %v52
    %v55 = vadd.f32 %v47, %v53
    %v56 = vld [vmem:[#allocation2 + $0x2] sm:$0x1]
    %v57 = vld [vmem:[#allocation2 + $0x6] sm:$0x1]
    %s58 = sld [smem:[#allocation6 + $0x2]]
    %v59 = vstv %s58
    %v60 = vmul.f32 %v56, %v59
    %v61 = vmul.f32 %v57, %v59
    %v62 = vadd.f32 %v54, %v60
    %v63 = vadd.f32 %v55, %v61
    %v64 = vld [vmem:[#allocation2 + $0x3] sm:$0x1]
    %v65 = vld [vmem:[#allocation2 + $0x7] sm:$0x1]
    %s66 = sld [smem:[#allocation6 + $0x3]]
    %v67 = vstv %s66
    %v68 = vmul.f32 %v64, %v67
    %v69 = vmul.f32 %v65, %v67
    %v70 = vadd.f32 %v62, %v68
    %v71 = vadd.f32 %v63, %v69
    %v74 = vrot.slane %v71, 7
    %vm75 = vcmask 1041409
    %v76 = vsel %vm75, %v74, %v70
    %vm78 = vcmask 1041408
    %v79 = vsel %vm78, %v76, -inf
    %80 = vmax.xlane.f32.xlu0 %v79
    %v81 = vpop.xlane.xlu0 %80
    %v83 = vrot.slane %v81, 1
    %v86 = vsub.f32 %v70, %v81
    %v87 = vsub.f32 %v71, %v83
    %v88 = vmul.f32 %v86, 1.442695
    %v89 = vpow.pop %v88
    %v90 = vmul.f32 %v87, 1.442695
    %v91 = vpow.pop %v90
    %v92 = vld [vmem:[%s2] sm:$0x1]
    %v94 = vlaneseq
    %v95 = vshrl.u32 %v94, 7
    %v96 = vsub.s32 0, %v95
    %v97 = vrot.slane %v92, %v96
    %v99 = vmul.f32 %v89, %v97
    %v100 = vmul.f32 %v91, %v97
    %v103 = vrot.slane %v100, 7
    %v104 = vsel %vm75, %v103, %v99
    %v106 = vsel %vm78, %v104, 0.0
    %107 = vadd.xlane.f32.xlu0 %v106
    %v108 = vpop.xlane.xlu0 %107
    %v110 = vrot.slane %v108, 1
    %v113 = vrcp.pop %v108
    %v114 = vmul.f32 %v99, %v113
    %v115 = vrcp.pop %v110
    %v116 = vmul.f32 %v100, %v115
    %v119 = vrot.slane %v116, 7
    %v120 = vsel %vm75, %v119, %v114
    %122 = vst [vmem:[#allocation7] sm:$0x3] %v120
    // Predicated region
    $region22: #{tpu_custom_call.1} parent=1 // pred_check
      _
    $region23: #{tpu_custom_call.1} parent=1 // pred_check_branch
      %124 = sbr.rel (0) target = $region25
    $region24: #{tpu_custom_call.1} parent=1 // pred_region
      %s126 = ssub.s32 32, 32
      %127 = vsyncadd [#allocation4], %s126
      %s129 = sshll.u32 [#allocation7], 4
      %s130 = int_to_ptr.vmem [resolvable:$true] %s129
      %132 = dma.vmem_to_hbm [thread:$0]  %s130, 32, %s3, [#allocation4]
    $region25: #{tpu_custom_call.1} parent=1 // pred_fallthru
      _
    // Predicated region
    $region26: #{tpu_custom_call.1} parent=1 // pred_check
      _
    $region27: #{tpu_custom_call.1} parent=1 // pred_check_branch
      %134 = sbr.rel (0) target = $region29
    $region28: #{tpu_custom_call.1} parent=1 // pred_region
      %135 = dma.done [#allocation4], 32
    $region29: #{tpu_custom_call.1} parent=1 // pred_fallthru
      _
    %136 = vsyncpa [#allocation3], 1
    %137 = vsyncpa [#allocation4], 1
    %138 = vsyncpa [#allocation5], 1

</llo_original>
